<compile_context>
chip_gen: v7x
topology: tpu7x:2x2x1
jax: 0.10.0
libtpu: 0.0.40
codegen_flags: <defaults>
</compile_context>

<pallas_src>
import functools

import jax
import jax.numpy as jnp
import numpy as np
from jax.experimental import pallas as pl
from jax.experimental.pallas import tpu as pltpu

# 48 MiB: safe on v7x (64 MiB physical, everything double-buffered), fine on
# v5e / v6e (128 MiB physical).
_VMEM_LIMIT_BYTES = 48 * 1024 * 1024


def _round_up(v, m):
    return -(-v // m) * m


def fused_probe_kernel(x_ref, w1_ref, b1_ref, w2_ref, labels_ref,
                       pout_ref, clp_ref, hid_ref, *,
                       batch_per_tile, pos, rc, options, scale, matmul_dtype):
    """Grid = (row_tiles, modes); modes is the inner (sequential) axis.

    Per step:
      x_ref:      (TR, D)   input dtype (block resident across the modes axis)
      w1_ref:     (D, Hp)   matmul dtype      b1_ref: (1, Hp) f32
      w2_ref:     (Hp, N)   matmul dtype, option-blocked N = O*RC
      labels_ref: (TR, RC)  int32
      pout_ref:   (TR, N)   probe_out storage dtype
      clp_ref:    (P, RC)   f32 per-(row_tile, mode) partial
      hid_ref:    (TR, Hp)  VMEM scratch, written once per row tile
    """
    m = pl.program_id(1)

    # hidden = relu(x @ W1 + b1): computed once per row tile (mode == 0) and
    # kept in VMEM scratch for the remaining modes — no HBM round trip, and
    # the f32->matmul-dtype cast of x happens in vregs, not in the wrapper.
    @pl.when(m == 0)
    def _():
        h = jnp.dot(x_ref[...].astype(matmul_dtype), w1_ref[...],
                    preferred_element_type=jnp.float32)
        h = jnp.maximum(h + b1_ref[...], 0.0)
        hid_ref[...] = h.astype(hid_ref.dtype)

    # One wide MXU dot: N = O*RC lanes -> lane-dense probe_out store.
    logits = jnp.dot(hid_ref[...], w2_ref[...],
                     preferred_element_type=jnp.float32)        # (TR, N) f32
    pout_ref[...] = logits.astype(pout_ref.dtype)

    labels = labels_ref[...]                                    # (TR, RC)

    # log-softmax over the option-blocked lane slices.  Each slice is taken
    # exactly once from the in-register f32 logits (never re-read from
    # pout_ref), so the loss keeps full f32 accuracy even with bf16 storage.
    sl = [logits[:, o * rc:(o + 1) * rc] for o in range(options)]
    mx = sl[0]
    for o in range(1, options):
        mx = jnp.maximum(mx, sl[o])
    sumexp = jnp.zeros_like(mx)
    picked = jnp.zeros_like(mx)
    for o in range(options):
        sumexp = sumexp + jnp.exp(sl[o] - mx)
        picked = picked + jnp.where(labels == o, sl[o], 0.0)
    s = picked - (mx + jnp.log(sumexp))                         # (TR, RC)

    # Reduce over the batch elements of this row tile (keep pos): cheap VPU
    # adds.  (If pos is not a multiple of 8 this reshape may force a sublane
    # relayout — perf only, not correctness.)
    s = s.reshape(batch_per_tile, pos, rc)
    clp_ref[...] = jnp.sum(s, axis=0) * scale


def _auto_batch_tile(batch, pos, bytes_per_row, vmem_budget, max_rows=4096):
    """Largest whole-batch-element tile whose row count is a multiple of 8
    (or covers all rows) and whose per-step VMEM estimate fits the budget."""
    valid = [tb for tb in range(1, batch + 1)
             if batch % tb == 0 and ((tb * pos) % 8 == 0 or tb == batch)]
    fitting = [tb for tb in valid
               if tb * pos <= max_rows
               and tb * pos * bytes_per_row <= vmem_budget]
    if fitting:
        return max(fitting)
    return min(valid)


@functools.partial(
    jax.jit,
    static_argnames=("matmul_dtype", "probe_out_dtype", "batch_tile",
                     "return_torch_layout"))
def nonlinear_probe_forward(x, labels, W1, b1, W2, *,
                            matmul_dtype=jnp.bfloat16,
                            probe_out_dtype=jnp.float32,
                            batch_tile=None,
                            return_torch_layout=False):
    """NonLinearProbe forward.

    x:      (batch, pos, d_model) float
    labels: (modes, batch, pos, rows, cols) int — argmax(-1) of the module's
            state_stack_one_hot (integer labels instead of the dense one-hot
            cut the largest HBM input by the `options` factor).
    Returns (probe_out, loss).  probe_out is the kernel-native
    (modes, batch, pos, options, rows, cols) layout by default (no full-size
    transpose is emitted); pass return_torch_layout=True for the module's
    (modes, batch, pos, rows, cols, options) layout.
    """
    B, P, D = x.shape
    modes, H, R, C, O = W2.shape
    BP, RC = B * P, R * C
    N = O * RC
    Hp = _round_up(H, 128)          # lane-dense hidden scratch / aligned MXU K

    mdt = jnp.dtype(matmul_dtype)
    pdt = jnp.dtype(probe_out_dtype)
    f32 = jnp.float32
    msz, psz = mdt.itemsize, pdt.itemsize

    if batch_tile is None:
        # double-buffered x / labels / pout + single hidden scratch, per row
        bytes_per_row = (2 * D * x.dtype.itemsize
                         + 2 * _round_up(RC, 128) * 4
                         + 2 * _round_up(N, 128) * psz
                         + Hp * msz)
        batch_tile = _auto_batch_tile(B, P, bytes_per_row,
                                      vmem_budget=_VMEM_LIMIT_BYTES // 2)
    if B % batch_tile:
        raise ValueError(f"batch_tile={batch_tile} must divide batch={B}")
    TR = batch_tile * P
    if TR % 8 and TR != BP:
        raise ValueError(f"row tile {TR} must be a multiple of 8 or cover all rows")
    num_r = BP // TR

    # --- cheap wrapper glue: only small parameter arrays are reshaped/cast ---
    x2 = x.reshape(BP, D)                                       # no dtype cast
    w1p = jnp.pad(W1, ((0, 0), (0, Hp - H))).astype(mdt)        # (D, Hp)
    b1p = jnp.pad(b1, (0, Hp - H)).reshape(1, Hp).astype(f32)   # (1, Hp)
    # option-blocked N:  w2k[m, h, o*RC + r*C + c] = W2[m, h, r, c, o]
    w2k = jnp.transpose(W2, (0, 1, 4, 2, 3)).reshape(modes, H, N)
    w2k = jnp.pad(w2k, ((0, 0), (0, Hp - H), (0, 0))).astype(mdt)
    labk = labels.reshape(modes, BP, RC).astype(jnp.int32)
    # TODO(synk): int8 labels (options < 128) would shrink this stream 4x on
    # v5e; kept int32 for lowering robustness.

    kern = functools.partial(
        fused_probe_kernel, batch_per_tile=batch_tile, pos=P, rc=RC,
        options=O, scale=3.0 / (B * O), matmul_dtype=mdt)

    pout, pclp = pl.pallas_call(
        kern,
        grid_spec=pltpu.PrefetchScalarGridSpec(
            num_scalar_prefetch=0,
            grid=(num_r, modes),
            in_specs=[
                pl.BlockSpec((TR, D), lambda r, m: (r, 0)),              # x
                pl.BlockSpec((D, Hp), lambda r, m: (0, 0)),              # W1
                pl.BlockSpec((1, Hp), lambda r, m: (0, 0)),              # b1
                pl.BlockSpec((None, Hp, N), lambda r, m: (m, 0, 0)),     # W2
                pl.BlockSpec((None, TR, RC), lambda r, m: (m, r, 0)),    # labels
            ],
            out_specs=(
                pl.BlockSpec((None, TR, N), lambda r, m: (m, r, 0)),     # probe_out
                pl.BlockSpec((None, None, P, RC),
                             lambda r, m: (r, m, 0, 0)),                 # clp partial
            ),
            scratch_shapes=[pltpu.VMEM((TR, Hp), mdt)],                  # hidden
        ),
        out_shape=(
            jax.ShapeDtypeStruct((modes, BP, N), pdt),
            jax.ShapeDtypeStruct((num_r, modes, P, RC), f32),
        ),
        compiler_params=pltpu.CompilerParams(
            dimension_semantics=("parallel", "arbitrary"),
            vmem_limit_bytes=_VMEM_LIMIT_BYTES),
        cost_estimate=pl.CostEstimate(
            flops=2 * BP * D * Hp + 2 * modes * BP * Hp * N,
            transcendentals=modes * BP * (N + RC),
            bytes_accessed=(BP * D * x.dtype.itemsize
                            + modes * BP * RC * 4
                            + modes * BP * N * psz
                            + num_r * (D * Hp + modes * Hp * N) * msz
                            + num_r * modes * P * RC * 4)),
    )(x2, w1p, b1p, w2k, labk)

    # loss = -probe_correct_log_probs[0].mean(over pos).sum(); the per-tile
    # partials are tiny and summed here in XLA so row tiles can run in
    # parallel on v7x megacore without racing an accumulator.
    clp0 = jnp.sum(pclp[:, 0], axis=0)                          # (P, RC)
    loss = -jnp.sum(clp0) / P

    probe_out = pout.reshape(modes, B, P, O, R, C)
    if return_torch_layout:
        # Full-size transpose of the largest array — only emitted when a
        # consumer really needs the torch (..., rows, cols, options) layout.
        probe_out = jnp.transpose(probe_out, (0, 1, 2, 4, 5, 3))
    return probe_out, loss


def reference_forward(x, state_stack_one_hot, W1, b1, W2):
    hidden = jax.nn.relu(x @ W1 + b1)
    probe_out = jnp.einsum('bph,mhrco->mbprco', hidden, W2)
    logp = jax.nn.log_softmax(probe_out, axis=-1)
    clp = (logp * state_stack_one_hot).mean(axis=(1, 5)) * 3.0
    loss = -clp[0].mean(axis=0).sum()
    return probe_out, loss


if __name__ == "__main__":
    # small shapes consistent with the module
    B, P, D = 4, 8, 32            # batch, pos, d_model
    H = 64                        # hidden_dim (module default)
    modes, R, C, O = 2, 8, 8, 3   # modes, rows, cols, options

    key = jax.random.PRNGKey(0)
    k1, k2, k3, kx, ks = jax.random.split(key, 5)

    bound = 1.0 / np.sqrt(D)
    W1 = jax.random.uniform(k1, (D, H), minval=-bound, maxval=bound,
                            dtype=jnp.float32)              # Linear weight (x @ W1)
    b1 = jax.random.uniform(k2, (H,), minval=-bound, maxval=bound,
                            dtype=jnp.float32)              # Linear bias
    W2 = (jax.random.normal(k3, (modes, H, R, C, O), dtype=jnp.float32)
          / np.sqrt(H))                                      # output_layer

    x = jax.random.normal(kx, (B, P, D), dtype=jnp.float32)
    labels = jax.random.randint(ks, (modes, B, P, R, C), 0, O)
    state_stack_one_hot = jax.nn.one_hot(labels, O, dtype=jnp.float32)

    ref_out, ref_loss = reference_forward(x, state_stack_one_hot, W1, b1, W2)

    # exact path: f32 at the MXU, f32 probe_out, torch layout, two row tiles
    # (exercises per-tile clp partials + the pl.when(mode==0) hidden scratch).
    out32, loss32 = nonlinear_probe_forward(
        x, labels, W1, b1, W2, matmul_dtype=jnp.float32,
        probe_out_dtype=jnp.float32, batch_tile=2, return_torch_layout=True)
    out32, loss32 = jax.block_until_ready((out32, loss32))
    assert out32.shape == (modes, B, P, R, C, O)
    np.testing.assert_allclose(np.asarray(out32), np.asarray(ref_out),
                               rtol=1e-4, atol=1e-4)
    np.testing.assert_allclose(np.asarray(loss32), np.asarray(ref_loss),
                               rtol=1e-4, atol=1e-4)

    # fast path: bf16 at the MXU + bf16 probe_out storage, kernel-native
    # layout (default, no output transpose), auto VMEM-aware row tile.
    out16, loss16 = nonlinear_probe_forward(
        x, labels, W1, b1, W2, matmul_dtype=jnp.bfloat16,
        probe_out_dtype=jnp.bfloat16)
    out16, loss16 = jax.block_until_ready((out16, loss16))
    assert out16.shape == (modes, B, P, O, R, C)
    ref_native = jnp.transpose(ref_out, (0, 1, 2, 5, 3, 4))
    np.testing.assert_allclose(np.asarray(out16.astype(jnp.float32)),
                               np.asarray(ref_native),
                               rtol=5e-2, atol=5e-2)
    np.testing.assert_allclose(np.asarray(loss16), np.asarray(ref_loss),
                               rtol=5e-2, atol=5e-2)

    print("KERNEL_OK")
</pallas_src>

<mosaic_0001>
module attributes {stable_mosaic.version = 11 : i64} {
  func.func @fused_probe_kernel(%arg0: i32, %arg1: i32, %arg2: memref<16x32xf32, #tpu.memory_space<vmem>>, %arg3: memref<32x128xf32, #tpu.memory_space<vmem>>, %arg4: memref<1x128xf32, #tpu.memory_space<vmem>>, %arg5: memref<1x128x192xf32, #tpu.memory_space<vmem>>, %arg6: memref<1x16x64xi32, #tpu.memory_space<vmem>>, %arg7: memref<1x16x192xf32, #tpu.memory_space<vmem>>, %arg8: memref<1x1x8x64xf32, #tpu.memory_space<vmem>>, %arg9: memref<16x128xf32, #tpu.memory_space<vmem>>) attributes {dimension_semantics = [#tpu.dimension_semantics<parallel>, #tpu.dimension_semantics<arbitrary>], iteration_bounds = array<i64: 2, 2>, scalar_prefetch = 0 : i64, scratch_operands = 1 : i64, tpu.core_type = #tpu.core_type<tc>, window_params = [{transform_indices = @transform_0, window_bounds = array<i64: 16, 32>}, {pipeline_mode = #tpu.pipeline_mode<synchronous>, transform_indices = @transform_1, window_bounds = array<i64: 32, 128>}, {pipeline_mode = #tpu.pipeline_mode<synchronous>, transform_indices = @transform_2, window_bounds = array<i64: 1, 128>}, {transform_indices = @transform_3, window_bounds = array<i64: 1, 128, 192>}, {transform_indices = @transform_4, window_bounds = array<i64: 1, 16, 64>}, {transform_indices = @transform_5, window_bounds = array<i64: 1, 16, 192>}, {transform_indices = @transform_6, window_bounds = array<i64: 1, 1, 8, 64>}]} {
    %c0_i32 = arith.constant 0 : i32
    %0 = arith.cmpi eq, %arg1, %c0_i32 : i32
    %1 = arith.extui %0 : i1 to i32
    %c0_i32_0 = arith.constant 0 : i32
    %2 = arith.cmpi ne, %1, %c0_i32_0 : i32
    scf.if %2 {
      %c0_23 = arith.constant 0 : index
      %c0_24 = arith.constant 0 : index
      %53 = vector.load %arg2[%c0_23, %c0_24] : memref<16x32xf32, #tpu.memory_space<vmem>>, vector<16x32xf32>
      %c0_25 = arith.constant 0 : index
      %c0_26 = arith.constant 0 : index
      %54 = vector.load %arg3[%c0_25, %c0_26] : memref<32x128xf32, #tpu.memory_space<vmem>>, vector<32x128xf32>
      %cst_27 = arith.constant dense<0.000000e+00> : vector<16x128xf32>
      %55 = tpu.matmul %53, %54, %cst_27 {dimension_numbers = #tpu.dot_dimension_numbers<[1], [0], [0], [1], [0, 0, 1, 1], [], []>} : vector<16x32xf32>, vector<32x128xf32>, vector<16x128xf32> -> vector<16x128xf32>
      %c0_28 = arith.constant 0 : index
      %c0_29 = arith.constant 0 : index
      %56 = vector.load %arg4[%c0_28, %c0_29] : memref<1x128xf32, #tpu.memory_space<vmem>>, vector<1x128xf32>
      %57 = vector.broadcast %56 : vector<1x128xf32> to vector<16x128xf32>
      %58 = arith.addf %55, %57 : vector<16x128xf32>
      %cst_30 = arith.constant 0.000000e+00 : f32
      %59 = vector.broadcast %cst_30 : f32 to vector<16x128xf32>
      %60 = arith.maximumf %58, %59 : vector<16x128xf32>
      %c0_31 = arith.constant 0 : index
      %c0_32 = arith.constant 0 : index
      %61 = vector.load %arg9[%c0_31, %c0_32] : memref<16x128xf32, #tpu.memory_space<vmem>>, vector<16x128xf32>
      tpu.vector_store %arg9[%c0_31, %c0_32], %60 {strides = array<i32>} : memref<16x128xf32, #tpu.memory_space<vmem>>, vector<16x128xf32>,
    } else {
    }
    %c0 = arith.constant 0 : index
    %c0_1 = arith.constant 0 : index
    %3 = vector.load %arg9[%c0, %c0_1] : memref<16x128xf32, #tpu.memory_space<vmem>>, vector<16x128xf32>
    %c0_2 = arith.constant 0 : index
    %c0_3 = arith.constant 0 : index
    %c0_4 = arith.constant 0 : index
    %4 = vector.load %arg5[%c0_2, %c0_3, %c0_4] : memref<1x128x192xf32, #tpu.memory_space<vmem>>, vector<1x128x192xf32>
    %5 = vector.shape_cast %4 : vector<1x128x192xf32> to vector<128x192xf32>
    %cst = arith.constant dense<0.000000e+00> : vector<16x192xf32>
    %6 = tpu.matmul %3, %5, %cst {dimension_numbers = #tpu.dot_dimension_numbers<[1], [0], [0], [1], [0, 0, 1, 1], [], []>} : vector<16x128xf32>, vector<128x192xf32>, vector<16x192xf32> -> vector<16x192xf32>
    %c0_5 = arith.constant 0 : index
    %c0_6 = arith.constant 0 : index
    %c0_7 = arith.constant 0 : index
    %7 = vector.load %arg7[%c0_5, %c0_6, %c0_7] : memref<1x16x192xf32, #tpu.memory_space<vmem>>, vector<1x16x192xf32>
    %8 = vector.shape_cast %7 : vector<1x16x192xf32> to vector<16x192xf32>
    %9 = vector.shape_cast %6 : vector<16x192xf32> to vector<1x16x192xf32>
    tpu.vector_store %arg7[%c0_5, %c0_6, %c0_7], %9 {strides = array<i32>} : memref<1x16x192xf32, #tpu.memory_space<vmem>>, vector<1x16x192xf32>,
    %c0_8 = arith.constant 0 : index
    %c0_9 = arith.constant 0 : index
    %c0_10 = arith.constant 0 : index
    %10 = vector.load %arg6[%c0_8, %c0_9, %c0_10] : memref<1x16x64xi32, #tpu.memory_space<vmem>>, vector<1x16x64xi32>
    %11 = vector.shape_cast %10 : vector<1x16x64xi32> to vector<16x64xi32>
    %12 = vector.extract_strided_slice %6 {offsets = [0, 0], sizes = [16, 64], strides = [1, 1]} : vector<16x192xf32> to vector<16x64xf32>
    %13 = vector.extract_strided_slice %6 {offsets = [0, 64], sizes = [16, 64], strides = [1, 1]} : vector<16x192xf32> to vector<16x64xf32>
    %14 = vector.extract_strided_slice %6 {offsets = [0, 128], sizes = [16, 64], strides = [1, 1]} : vector<16x192xf32> to vector<16x64xf32>
    %15 = arith.maximumf %12, %13 : vector<16x64xf32>
    %16 = arith.maximumf %15, %14 : vector<16x64xf32>
    %cst_11 = arith.constant 0.000000e+00 : f32
    %17 = vector.broadcast %cst_11 : f32 to vector<16x64xf32>
    %cst_12 = arith.constant 0.000000e+00 : f32
    %18 = vector.broadcast %cst_12 : f32 to vector<16x64xf32>
    %19 = arith.subf %12, %16 : vector<16x64xf32>
    %20 = math.exp %19 : vector<16x64xf32>
    %21 = arith.addf %17, %20 : vector<16x64xf32>
    %c0_i32_13 = arith.constant 0 : i32
    %22 = vector.broadcast %c0_i32_13 : i32 to vector<16x64xi32>
    %23 = arith.cmpi eq, %11, %22 : vector<16x64xi32>
    %cst_14 = arith.constant 0.000000e+00 : f32
    %24 = vector.broadcast %cst_14 : f32 to vector<16x64xf32>
    %25 = arith.select %23, %12, %24 : vector<16x64xi1>, vector<16x64xf32>
    %26 = arith.addf %18, %25 : vector<16x64xf32>
    %27 = arith.subf %13, %16 : vector<16x64xf32>
    %28 = math.exp %27 : vector<16x64xf32>
    %29 = arith.addf %21, %28 : vector<16x64xf32>
    %c1_i32 = arith.constant 1 : i32
    %30 = vector.broadcast %c1_i32 : i32 to vector<16x64xi32>
    %31 = arith.cmpi eq, %11, %30 : vector<16x64xi32>
    %cst_15 = arith.constant 0.000000e+00 : f32
    %32 = vector.broadcast %cst_15 : f32 to vector<16x64xf32>
    %33 = arith.select %31, %13, %32 : vector<16x64xi1>, vector<16x64xf32>
    %34 = arith.addf %26, %33 : vector<16x64xf32>
    %35 = arith.subf %14, %16 : vector<16x64xf32>
    %36 = math.exp %35 : vector<16x64xf32>
    %37 = arith.addf %29, %36 : vector<16x64xf32>
    %c2_i32 = arith.constant 2 : i32
    %38 = vector.broadcast %c2_i32 : i32 to vector<16x64xi32>
    %39 = arith.cmpi eq, %11, %38 : vector<16x64xi32>
    %cst_16 = arith.constant 0.000000e+00 : f32
    %40 = vector.broadcast %cst_16 : f32 to vector<16x64xf32>
    %41 = arith.select %39, %14, %40 : vector<16x64xi1>, vector<16x64xf32>
    %42 = arith.addf %34, %41 : vector<16x64xf32>
    %43 = math.log %37 : vector<16x64xf32>
    %44 = arith.addf %16, %43 : vector<16x64xf32>
    %45 = arith.subf %42, %44 : vector<16x64xf32>
    %46 = vector.shape_cast %45 : vector<16x64xf32> to vector<2x8x64xf32>
    %cst_17 = arith.constant dense<0.000000e+00> : vector<8x64xf32>
    %47 = vector.multi_reduction <add>, %46, %cst_17 [0] : vector<2x8x64xf32> to vector<8x64xf32>
    %cst_18 = arith.constant 2.500000e-01 : f32
    %48 = vector.broadcast %cst_18 : f32 to vector<8x64xf32>
    %49 = arith.mulf %47, %48 : vector<8x64xf32>
    %c0_19 = arith.constant 0 : index
    %c0_20 = arith.constant 0 : index
    %c0_21 = arith.constant 0 : index
    %c0_22 = arith.constant 0 : index
    %50 = vector.load %arg8[%c0_19, %c0_20, %c0_21, %c0_22] : memref<1x1x8x64xf32, #tpu.memory_space<vmem>>, vector<1x1x8x64xf32>
    %51 = vector.shape_cast %50 : vector<1x1x8x64xf32> to vector<8x64xf32>
    %52 = vector.shape_cast %49 : vector<8x64xf32> to vector<1x1x8x64xf32>
    tpu.vector_store %arg8[%c0_19, %c0_20, %c0_21, %c0_22], %52 {strides = array<i32>} : memref<1x1x8x64xf32, #tpu.memory_space<vmem>>, vector<1x1x8x64xf32>,
    return
  }
  func.func @transform_0(%arg0: i32, %arg1: i32) -> (i32, i32) {
    %c0_i32 = arith.constant 0 : i32
    %c0_i32_0 = arith.constant 0 : i32
    return %arg0, %c0_i32 : i32, i32
  }
  func.func @transform_1(%arg0: i32, %arg1: i32) -> (i32, i32) {
    %c0_i32 = arith.constant 0 : i32
    %c0_i32_0 = arith.constant 0 : i32
    %c0_i32_1 = arith.constant 0 : i32
    return %c0_i32, %c0_i32_0 : i32, i32
  }
  func.func @transform_2(%arg0: i32, %arg1: i32) -> (i32, i32) {
    %c0_i32 = arith.constant 0 : i32
    %c0_i32_0 = arith.constant 0 : i32
    %c0_i32_1 = arith.constant 0 : i32
    return %c0_i32, %c0_i32_0 : i32, i32
  }
  func.func @transform_3(%arg0: i32, %arg1: i32) -> (i32, i32, i32) {
    %c0_i32 = arith.constant 0 : i32
    %c0_i32_0 = arith.constant 0 : i32
    %c0_i32_1 = arith.constant 0 : i32
    return %arg1, %c0_i32, %c0_i32_0 : i32, i32, i32
  }
  func.func @transform_4(%arg0: i32, %arg1: i32) -> (i32, i32, i32) {
    %c0_i32 = arith.constant 0 : i32
    %c0_i32_0 = arith.constant 0 : i32
    return %arg1, %arg0, %c0_i32 : i32, i32, i32
  }
  func.func @transform_5(%arg0: i32, %arg1: i32) -> (i32, i32, i32) {
    %c0_i32 = arith.constant 0 : i32
    %c0_i32_0 = arith.constant 0 : i32
    return %arg1, %arg0, %c0_i32 : i32, i32, i32
  }
  func.func @transform_6(%arg0: i32, %arg1: i32) -> (i32, i32, i32, i32) {
    %c0_i32 = arith.constant 0 : i32
    %c0_i32_0 = arith.constant 0 : i32
    %c0_i32_1 = arith.constant 0 : i32
    return %arg0, %arg1, %c0_i32, %c0_i32_0 : i32, i32, i32, i32
  }
}

</mosaic_0001>

<llo_original>
// kernel: nonlinear_probe_forward.1
$region0: #{nonlinear_probe_forward.1}
  #allocation0 [shape = 'u32[]', space=smem, size = 0x4, offset = 0x4, fixed_abs, tag = 'smem constant byte address 0x4 - core index']
  #allocation1 [shape = 'u32[144,128]{1,0:T(1,128)}', space=vmem, size = 0x12000, scoped, tag = 'internal scratch']
  #allocation2 [shape = 'f32[16,128]{1,0:T(8,128)}', space=vmem, size = 0x2000, scoped, tag = 'scratch operand']
  %s0 = inlined_call_operand.vmem [shape: f32[32,32], index: 0, kind: input, shape index: {}]
  %s1 = inlined_call_operand.vmem [shape: f32[32,128], index: 1, kind: input, shape index: {}]
  %s2 = inlined_call_operand.vmem [shape: f32[1,128], index: 2, kind: input, shape index: {}]
  %s3 = inlined_call_operand.vmem [shape: f32[2,128,192], index: 3, kind: input, shape index: {}]
  %s4 = inlined_call_operand.vmem [shape: s32[2,32,64], index: 4, kind: input, shape index: {}]
  %s5 = inlined_call_operand.vmem [shape: f32[2,32,192], index: 5, kind: output, shape index: {0}]
  %s6 = inlined_call_operand.vmem [shape: f32[2,2,8,64], index: 6, kind: output, shape index: {1}]
  %7 = xla_tuple %s5, %s6
  %s8 = sld [smem:[#allocation0]]
  $region65: #{nonlinear_probe_forward.1} parent=0
    _
  %s10 = ssub.s32 1, %s8
  %s11 = scalar_select 0, %s10, %s8
  loop: start=0, step=1, limit=6
  $region2: #{nonlinear_probe_forward.1} parent=0 // loop_pre_header
    _
  $region3: #{nonlinear_probe_forward.1} parent=0 // loop_header
    %s13 = sphi 0, %s17
    %p14 = scmp.ge.s32.totalorder %s13, 6
    %s20 = sphi 0, %s32
    %s21 = sphi 0, %s28
    %s22 = sphi 0, %s20
    %s23 = sphi 0, %s21
    %s24 = sphi 0, %s22
    %s25 = sphi 0, %s23
    %s35 = sphi 0, %s37
    %s38 = sphi 0, %s35
    %s39 = sphi 0, %s38
    %s55 = sphi 0, %s39
    %s59 = sphi 0, %s59
    %s61 = sphi 0, %s59
    %s62 = sphi 0, %s61
    %s76 = sphi 0, %s62
    %s80 = sphi 0, %s80
    %s82 = sphi 0, %s80
    %s83 = sphi 0, %s82
    %s97 = sphi 0, %s83
    %s103 = sphi 0, %s105
    %s106 = sphi 0, %s103
    %s107 = sphi 0, %s106
    %s123 = sphi 0, %s107
    %s131 = sphi 0, %s133
    %s134 = sphi 0, %s131
    %s135 = sphi 0, %s134
    %s151 = sphi 0, %s135
    %s159 = sphi 0, %s161
    %s162 = sphi 0, %s159
    %s163 = sphi 0, %s162
    %s179 = sphi 0, %s163
    %s187 = sphi 0, %s189
    %s190 = sphi 0, %s187
    %s191 = sphi 0, %s190
    %s207 = sphi 0, %s191
  $region4: #{nonlinear_probe_forward.1} parent=0 // loop_header_branch
    %16 = sbr.rel (%p14) target = $region8
  $region5: #{nonlinear_probe_forward.1} parent=0 // loop_body
    %s18 = ssub.s32 %s13, 1
    %s19 = ssub.s32 %s13, 2
    %s26 = sadd.s32 1, %s21
    %p27 = scmp.ge.s32.totalorder %s26, 2
    %s28 = scalar_select %p27, 0, %s26
    %s29 = sadd.s32 1, %s20
    %s30 = scalar_select %p27, %s29, %s20
    %p31 = scmp.ge.s32.totalorder %s30, 2
    %s32 = scalar_select %p31, 0, %s30
    %s33 = ssub.s32 %s20, %s32
    %p34 = scmp.eq.s32.totalorder %s33, 0
    %s36 = sadd.s32 %s35, 1
    %s37 = scalar_select %p34, %s35, %s36
    %p40 = pneg %p34
    %p41 = scmp.eq.s32.totalorder %s13, 3
    %p42 = por %p40, %p41
    %p43 = scmp.ne.s32.totalorder %s35, %s38
    %p44 = scmp.eq.s32.totalorder %s13, 0
    %p45 = por %p43, %p44
    %p46 = scmp.ne.s32.totalorder %s35, %s38
    %p47 = scmp.eq.s32.totalorder %s18, 3
    %p48 = por %p46, %p47
    %p49 = scmp.ne.s32.totalorder %s38, %s39
    %p50 = scmp.eq.s32.totalorder %s18, 0
    %p51 = por %p49, %p50
    %p52 = scmp.ne.s32.totalorder %s38, %s39
    %p53 = scmp.eq.s32.totalorder %s19, 3
    %p54 = por %p52, %p53
    %p56 = scmp.ne.s32.totalorder %s39, %s55
    %p57 = scmp.eq.s32.totalorder %s19, 0
    %p58 = por %p56, %p57
    %s60 = sadd.s32 %s59, 1
    %p63 = scmp.eq.s32.totalorder %s13, 3
    %p64 = scmp.ne.s32.totalorder %s59, %s61
    %p65 = scmp.eq.s32.totalorder %s13, 0
    %p66 = por %p64, %p65
    %p67 = scmp.ne.s32.totalorder %s59, %s61
    %p68 = scmp.eq.s32.totalorder %s18, 3
    %p69 = por %p67, %p68
    %p70 = scmp.ne.s32.totalorder %s61, %s62
    %p71 = scmp.eq.s32.totalorder %s18, 0
    %p72 = por %p70, %p71
    %p73 = scmp.ne.s32.totalorder %s61, %s62
    %p74 = scmp.eq.s32.totalorder %s19, 3
    %p75 = por %p73, %p74
    %p77 = scmp.ne.s32.totalorder %s62, %s76
    %p78 = scmp.eq.s32.totalorder %s19, 0
    %p79 = por %p77, %p78
    %s81 = sadd.s32 %s80, 1
    %p84 = scmp.eq.s32.totalorder %s13, 3
    %p85 = scmp.ne.s32.totalorder %s80, %s82
    %p86 = scmp.eq.s32.totalorder %s13, 0
    %p87 = por %p85, %p86
    %p88 = scmp.ne.s32.totalorder %s80, %s82
    %p89 = scmp.eq.s32.totalorder %s18, 3
    %p90 = por %p88, %p89
    %p91 = scmp.ne.s32.totalorder %s82, %s83
    %p92 = scmp.eq.s32.totalorder %s18, 0
    %p93 = por %p91, %p92
    %p94 = scmp.ne.s32.totalorder %s82, %s83
    %p95 = scmp.eq.s32.totalorder %s19, 3
    %p96 = por %p94, %p95
    %p98 = scmp.ne.s32.totalorder %s83, %s97
    %p99 = scmp.eq.s32.totalorder %s19, 0
    %p100 = por %p98, %p99
    %s101 = ssub.s32 %s21, %s28
    %p102 = scmp.eq.s32.totalorder %s101, 0
    %s104 = sadd.s32 %s103, 1
    %s105 = scalar_select %p102, %s103, %s104
    %p108 = pneg %p102
    %p109 = scmp.eq.s32.totalorder %s13, 3
    %p110 = por %p108, %p109
    %p111 = scmp.ne.s32.totalorder %s103, %s106
    %p112 = scmp.eq.s32.totalorder %s13, 0
    %p113 = por %p111, %p112
    %p114 = scmp.ne.s32.totalorder %s103, %s106
    %p115 = scmp.eq.s32.totalorder %s18, 3
    %p116 = por %p114, %p115
    %p117 = scmp.ne.s32.totalorder %s106, %s107
    %p118 = scmp.eq.s32.totalorder %s18, 0
    %p119 = por %p117, %p118
    %p120 = scmp.ne.s32.totalorder %s106, %s107
    %p121 = scmp.eq.s32.totalorder %s19, 3
    %p122 = por %p120, %p121
    %p124 = scmp.ne.s32.totalorder %s107, %s123
    %p125 = scmp.eq.s32.totalorder %s19, 0
    %p126 = por %p124, %p125
    %s127 = ssub.s32 %s21, %s28
    %s128 = ssub.s32 %s20, %s32
    %s129 = sor.u32 %s127, %s128
    %p130 = scmp.eq.s32.totalorder %s129, 0
    %s132 = sadd.s32 %s131, 1
    %s133 = scalar_select %p130, %s131, %s132
    %p136 = pneg %p130
    %p137 = scmp.eq.s32.totalorder %s13, 3
    %p138 = por %p136, %p137
    %p139 = scmp.ne.s32.totalorder %s131, %s134
    %p140 = scmp.eq.s32.totalorder %s13, 0
    %p141 = por %p139, %p140
    %p142 = scmp.ne.s32.totalorder %s131, %s134
    %p143 = scmp.eq.s32.totalorder %s18, 3
    %p144 = por %p142, %p143
    %p145 = scmp.ne.s32.totalorder %s134, %s135
    %p146 = scmp.eq.s32.totalorder %s18, 0
    %p147 = por %p145, %p146
    %p148 = scmp.ne.s32.totalorder %s134, %s135
    %p149 = scmp.eq.s32.totalorder %s19, 3
    %p150 = por %p148, %p149
    %p152 = scmp.ne.s32.totalorder %s135, %s151
    %p153 = scmp.eq.s32.totalorder %s19, 0
    %p154 = por %p152, %p153
    %s155 = ssub.s32 %s21, %s28
    %s156 = ssub.s32 %s20, %s32
    %s157 = sor.u32 %s155, %s156
    %p158 = scmp.eq.s32.totalorder %s157, 0
    %s160 = sadd.s32 %s159, 1
    %s161 = scalar_select %p158, %s159, %s160
    %p164 = pneg %p158
    %p165 = scmp.eq.s32.totalorder %s13, 3
    %p166 = por %p164, %p165
    %p167 = scmp.ne.s32.totalorder %s159, %s162
    %p168 = scmp.eq.s32.totalorder %s13, 0
    %p169 = por %p167, %p168
    %p170 = scmp.ne.s32.totalorder %s159, %s162
    %p171 = scmp.eq.s32.totalorder %s18, 3
    %p172 = por %p170, %p171
    %p173 = scmp.ne.s32.totalorder %s162, %s163
    %p174 = scmp.eq.s32.totalorder %s18, 0
    %p175 = por %p173, %p174
    %p176 = scmp.ne.s32.totalorder %s162, %s163
    %p177 = scmp.eq.s32.totalorder %s19, 3
    %p178 = por %p176, %p177
    %p180 = scmp.ne.s32.totalorder %s163, %s179
    %p181 = scmp.eq.s32.totalorder %s19, 0
    %p182 = por %p180, %p181
    %s183 = ssub.s32 %s20, %s32
    %s184 = ssub.s32 %s21, %s28
    %s185 = sor.u32 %s183, %s184
    %p186 = scmp.eq.s32.totalorder %s185, 0
    %s188 = sadd.s32 %s187, 1
    %s189 = scalar_select %p186, %s187, %s188
    %p192 = pneg %p186
    %p193 = scmp.eq.s32.totalorder %s13, 3
    %p194 = por %p192, %p193
    %p195 = scmp.ne.s32.totalorder %s187, %s190
    %p196 = scmp.eq.s32.totalorder %s13, 0
    %p197 = por %p195, %p196
    %p198 = scmp.ne.s32.totalorder %s187, %s190
    %p199 = scmp.eq.s32.totalorder %s18, 3
    %p200 = por %p198, %p199
    %p201 = scmp.ne.s32.totalorder %s190, %s191
    %p202 = scmp.eq.s32.totalorder %s18, 0
    %p203 = por %p201, %p202
    %p204 = scmp.ne.s32.totalorder %s190, %s191
    %p205 = scmp.eq.s32.totalorder %s19, 3
    %p206 = por %p204, %p205
    %p208 = scmp.ne.s32.totalorder %s191, %s207
    %p209 = scmp.eq.s32.totalorder %s19, 0
    %p210 = por %p208, %p209
    %p211 = scmp.le.s32.totalorder 1, %s13
    %p212 = scmp.lt.s32.totalorder %s13, 5
    %p213 = pnand %p211, %p212
    %p214 = pneg %p213
    // Predicated region
    $region9: #{nonlinear_probe_forward.1} parent=5 // pred_check
      _
    $region10: #{nonlinear_probe_forward.1} parent=5 // pred_check_branch
      %216 = sbr.rel (%p213) target = $region12
    $region11: #{nonlinear_probe_forward.1} parent=5 // pred_region
      %s217 = ssub.s32 %s13, 1
      // Predicated region
      $region13: #{nonlinear_probe_forward.1} parent=11 // pred_check
        %p218 = pneg %p72
      $region14: #{nonlinear_probe_forward.1} parent=11 // pred_check_branch
        %220 = sbr.rel (%p218) target = $region16
      $region15: #{nonlinear_probe_forward.1} parent=11 // pred_region
        _
      $region16: #{nonlinear_probe_forward.1} parent=11 // pred_fallthru
        _
      // Predicated region
      $region17: #{nonlinear_probe_forward.1} parent=11 // pred_check
        %p221 = pneg %p93
      $region18: #{nonlinear_probe_forward.1} parent=11 // pred_check_branch
        %223 = sbr.rel (%p221) target = $region20
      $region19: #{nonlinear_probe_forward.1} parent=11 // pred_region
        _
      $region20: #{nonlinear_probe_forward.1} parent=11 // pred_fallthru
        _
    $region12: #{nonlinear_probe_forward.1} parent=5 // pred_fallthru
      _
    %p224 = scmp.lt.s32.totalorder %s13, 4
    // Predicated region
    $region21: #{nonlinear_probe_forward.1} parent=5 // pred_check
      %p225 = pneg %p224
    $region22: #{nonlinear_probe_forward.1} parent=5 // pred_check_branch
      %227 = sbr.rel (%p225) target = $region24
    $region23: #{nonlinear_probe_forward.1} parent=5 // pred_region
      // Predicated region
      $region25: #{nonlinear_probe_forward.1} parent=23 // pred_check
        %p228 = pneg %p45
      $region26: #{nonlinear_probe_forward.1} parent=23 // pred_check_branch
        %230 = sbr.rel (%p228) target = $region28
      $region27: #{nonlinear_probe_forward.1} parent=23 // pred_region
        %s231 = smul.u32 2, %s20
        %p232 = scmp.lt.s32.totalorder %s231, 3
        %s233 = scalar_select %p232, %s231, 3
        %s234 = smul.addr %s233, 8
        %s235 = scalar_lea.vmem %s0, %s234
        %s236 = smul.u32 2, %s20
      $region28: #{nonlinear_probe_forward.1} parent=23 // pred_fallthru
        _
      // Predicated region
      $region29: #{nonlinear_probe_forward.1} parent=23 // pred_check
        %p237 = pneg %p113
      $region30: #{nonlinear_probe_forward.1} parent=23 // pred_check_branch
        %239 = sbr.rel (%p237) target = $region32
      $region31: #{nonlinear_probe_forward.1} parent=23 // pred_region
        %p240 = scmp.lt.s32.totalorder %s21, 1
        %s241 = scalar_select %p240, %s21, 1
        %s242 = smul.addr %s241, 32
        %s243 = smul.addr %s242, 8
        %s244 = scalar_lea.vmem %s3, %s243
      $region32: #{nonlinear_probe_forward.1} parent=23 // pred_fallthru
        _
      // Predicated region
      $region33: #{nonlinear_probe_forward.1} parent=23 // pred_check
        %p245 = pneg %p141
      $region34: #{nonlinear_probe_forward.1} parent=23 // pred_check_branch
        %247 = sbr.rel (%p245) target = $region36
      $region35: #{nonlinear_probe_forward.1} parent=23 // pred_region
        %s248 = smul.u32 2, %s20
        %p249 = scmp.lt.s32.totalorder %s21, 1
        %s250 = scalar_select %p249, %s21, 1
        %p251 = scmp.lt.s32.totalorder %s248, 3
        %s252 = scalar_select %p251, %s248, 3
        %s253 = smul.addr %s250, 4
        %s254 = sadd.s32 %s252, %s253
        %s255 = smul.addr %s254, 8
        %s256 = scalar_lea.vmem %s4, %s255
        %s257 = smul.u32 2, %s20
      $region36: #{nonlinear_probe_forward.1} parent=23 // pred_fallthru
        _
    $region24: #{nonlinear_probe_forward.1} parent=5 // pred_fallthru
      _
    %p258 = scmp.le.s32.totalorder 1, %s13
    %p259 = scmp.lt.s32.totalorder %s13, 5
    %p260 = pnand %p258, %p259
    %p261 = pneg %p260
    // Predicated region
    $region37: #{nonlinear_probe_forward.1} parent=5 // pred_check
      _
    $region38: #{nonlinear_probe_forward.1} parent=5 // pred_check_branch
      %263 = sbr.rel (%p260) target = $region40
    $region39: #{nonlinear_probe_forward.1} parent=5 // pred_region
      %s264 = ssub.s32 %s13, 1
      %s265 = smul.u32 2, %s22
      %p266 = scmp.lt.s32.totalorder %s265, 3
      %s267 = scalar_select %p266, %s265, 3
      %s268 = smul.addr %s267, 8
      %s269 = scalar_lea.vmem %s0, %s268
      %p270 = pneg %p51
      %p271 = pneg %p48
      %p272 = pneg %p72
      %p273 = pneg %p69
      %p274 = pneg %p93
      %p275 = pneg %p90
      %p276 = scmp.lt.s32.totalorder %s23, 1
      %s277 = scalar_select %p276, %s23, 1
      %s278 = smul.addr %s277, 32
      %s279 = smul.addr %s278, 8
      %s280 = scalar_lea.vmem %s3, %s279
      %p281 = pneg %p119
      %p282 = pneg %p116
      %s283 = smul.u32 2, %s22
      %p284 = scmp.lt.s32.totalorder %s23, 1
      %s285 = scalar_select %p284, %s23, 1
      %p286 = scmp.lt.s32.totalorder %s283, 3
      %s287 = scalar_select %p286, %s283, 3
      %s288 = smul.addr %s285, 4
      %s289 = sadd.s32 %s287, %s288
      %s290 = smul.addr %s289, 8
      %s291 = scalar_lea.vmem %s4, %s290
      %p292 = pneg %p147
      %p293 = pneg %p144
      %p294 = pneg %p175
      %p295 = pneg %p172
      %s296 = smul.u32 2, %s22
      %p297 = scmp.lt.s32.totalorder %s23, 1
      %s298 = scalar_select %p297, %s23, 1
      %p299 = scmp.lt.s32.totalorder %s296, 3
      %s300 = scalar_select %p299, %s296, 3
      %s301 = smul.addr %s300, 2
      %s302 = smul.addr %s298, 8
      %s303 = sadd.s32 %s301, %s302
      %s304 = smul.addr %s303, 8
      %s305 = scalar_lea.vmem %s5, %s304
      %p306 = pneg %p203
      %p307 = pneg %p200
      %p308 = scmp.lt.s32.totalorder %s22, 1
      %s309 = scalar_select %p308, %s22, 1
      %p310 = scmp.lt.s32.totalorder %s23, 1
      %s311 = scalar_select %p310, %s23, 1
      %s312 = smul.addr %s309, 2
      %s313 = sadd.s32 %s311, %s312
      %s314 = smul.addr %s313, 8
      %s315 = scalar_lea.vmem %s6, %s314
      %s316 = smul.u32 2, %s22
      %p317 = scmp.lt.s32.totalorder %s316, 3
      %s318 = scalar_select %p317, %s316, 3
      %s319 = smul.addr %s318, 8
      %s320 = scalar_lea.vmem %s0, %s319
      %s321 = smul.u32 2, %s22
      %p322 = scmp.lt.s32.totalorder %s23, 1
      %s323 = scalar_select %p322, %s23, 1
      %s324 = smul.addr %s323, 32
      %s325 = smul.addr %s324, 8
      %s326 = scalar_lea.vmem %s3, %s325
      %s327 = smul.u32 2, %s22
      %p328 = scmp.lt.s32.totalorder %s23, 1
      %s329 = scalar_select %p328, %s23, 1
      %p330 = scmp.lt.s32.totalorder %s327, 3
      %s331 = scalar_select %p330, %s327, 3
      %s332 = smul.addr %s329, 4
      %s333 = sadd.s32 %s331, %s332
      %s334 = smul.addr %s333, 8
      %s335 = scalar_lea.vmem %s4, %s334
      %s336 = smul.u32 2, %s22
      %s337 = smul.u32 2, %s22
      %p338 = scmp.lt.s32.totalorder %s23, 1
      %s339 = scalar_select %p338, %s23, 1
      %p340 = scmp.lt.s32.totalorder %s337, 3
      %s341 = scalar_select %p340, %s337, 3
      %s342 = smul.addr %s341, 2
      %s343 = smul.addr %s339, 8
      %s344 = sadd.s32 %s342, %s343
      %s345 = smul.addr %s344, 8
      %s346 = scalar_lea.vmem %s5, %s345
      %s347 = smul.u32 2, %s22
      %p348 = scmp.lt.s32.totalorder %s22, 1
      %s349 = scalar_select %p348, %s22, 1
      %p350 = scmp.lt.s32.totalorder %s23, 1
      %s351 = scalar_select %p350, %s23, 1
      %s352 = smul.addr %s349, 2
      %s353 = sadd.s32 %s351, %s352
      %s354 = smul.addr %s353, 8
      %s355 = scalar_lea.vmem %s6, %s354
      %p356 = scmp.eq.s32.totalorder %s23, 0
      // Predicated region
      $region41: #{nonlinear_probe_forward.1} parent=39 // pred_check
        %p357 = pneg %p356
      $region42: #{nonlinear_probe_forward.1} parent=39 // pred_check_branch
        %359 = sbr.rel (%p357) target = $region44
      $region43: #{nonlinear_probe_forward.1} parent=39 // pred_region
        %v360 = vld [vmem:[%s320] sm:$0xff]
        %v361 = vld [vmem:[%s320 + $0x8] sm:$0xff]
        %v362 = vld [vmem:[%s1] sm:$0xff]
        %v363 = vld [vmem:[%s1 + $0x8] sm:$0xff]
        %v364 = vld [vmem:[%s1 + $0x10] sm:$0xff]
        %v365 = vld [vmem:[%s1 + $0x18] sm:$0xff]
        %v366 = vld [vmem:[%s2] sm:$0x1]
        %v368 = vlaneseq
        %v369 = vshrl.u32 %v368, 7
        %v370 = vsub.s32 0, %v369
        %v371 = vrot.slane %v366, %v370
        %vm373 = vcmask 261120
        %v375 = vsel %vm373, %v360, 0
        %v378 = vsel %vm373, %v361, 0
        %380 = vmatprep.subr.mxu0 0.0
        %381 = vmatpush1.msra.mxu0 %v362
        %382 = vmatprep.subr.mxu0 0.0
        %383 = vmatpush1.msra.mxu0 %v363
        %384 = vmatprep.subr.mxu0 0.0
        %385 = vmatpush1.msra.mxu0 %v364
        %386 = vmatprep.subr.mxu0 0.0
        %387 = vmatpush1.msra.mxu0 %v365
        %388 = vmatprep.subr.mxu0 0.0
        %389 = vmatpush1.msra.mxu0 0.0
        %390 = vmatprep.subr.mxu0 0.0
        %391 = vmatpush1.msra.mxu0 0.0
        %392 = vmatprep.subr.mxu0 0.0
        %393 = vmatpush1.msra.mxu0 0.0
        %394 = vmatprep.subr.mxu0 0.0
        %395 = vmatpush1.msra.mxu0 0.0
        %396 = vmatprep.subr.mxu0 0.0
        %397 = vmatpush1.msra.mxu0 0.0
        %398 = vmatprep.subr.mxu0 0.0
        %399 = vmatpush1.msra.mxu0 0.0
        %400 = vmatprep.subr.mxu0 0.0
        %401 = vmatpush1.msra.mxu0 0.0
        %402 = vmatprep.subr.mxu0 0.0
        %403 = vmatpush1.msra.mxu0 0.0
        %404 = vmatprep.subr.mxu0 0.0
        %405 = vmatpush1.msra.mxu0 0.0
        %406 = vmatprep.subr.mxu0 0.0
        %407 = vmatpush1.msra.mxu0 0.0
        %408 = vmatprep.subr.mxu0 0.0
        %409 = vmatpush1.msra.mxu0 0.0
        %410 = vmatprep.subr.mxu0 0.0
        %411 = vmatpush1.msra.mxu0 0.0
        %412 = vmatprep.subr.mxu0 0.0
        %413 = vmatpush1.msra.mxu0 0.0
        %414 = vmatprep.subr.mxu0 0.0
        %415 = vmatpush1.msra.mxu0 0.0
        %416 = vmatprep.subr.mxu0 0.0
        %417 = vmatpush1.msra.mxu0 0.0
        %418 = vmatprep.subr.mxu0 0.0
        %419 = vmatpush1.msra.mxu0 0.0
        %420 = vmatprep.subr.mxu0 0.0
        %421 = vmatpush1.msra.mxu0 0.0
        %422 = vmatprep.subr.mxu0 0.0
        %423 = vmatpush1.msra.mxu0 0.0
        %424 = vmatprep.subr.mxu0 0.0
        %425 = vmatpush1.msra.mxu0 0.0
        %426 = vmatprep.subr.mxu0 0.0
        %427 = vmatpush1.msra.mxu0 0.0
        %428 = vmatprep.subr.mxu0 0.0
        %429 = vmatpush1.msra.mxu0 0.0
        %430 = vmatprep.subr.mxu0 0.0
        %431 = vmatpush1.msra.mxu0 0.0
        %432 = vmatprep.subr.mxu0 0.0
        %433 = vmatpush1.msra.mxu0 0.0
        %434 = vmatprep.subr.mxu0 0.0
        %435 = vmatpush1.msra.mxu0 0.0
        %436 = vmatprep.subr.mxu0 0.0
        %437 = vmatpush1.msra.mxu0 0.0
        %438 = vmatprep.subr.mxu0 0.0
        %439 = vmatpush1.msra.mxu0 0.0
        %440 = vmatprep.subr.mxu0 0.0
        %441 = vmatpush1.msra.mxu0 0.0
        %442 = vmatprep.subr.mxu0 0.0
        %443 = vmatpush1.msra.mxu0 0.0
        %444 = vmatprep.mubr.f32.mxu0 0.0
        %445 = vmatmul.mubr.f32.gmra.mrb[0].mxu0 %v375
        %v446 = vpop.f32.mrb[0].mxu0
        %v447 = vadd.f32 %v371, %v446
        %v448 = vpop.f32.mrb[0].mxu0
        %449 = vmatprep.mubr.f32.mxu0 0.0
        %450 = vmatmul.mubr.f32.gmra.mrb[0].mxu0 %v378
        %v451 = vpop.f32.mrb[0].mxu0
        %v452 = vadd.f32 %v371, %v451
        %v453 = vpop.f32.mrb[0].mxu0
        %454 = vdwg.mxu0
        %v455 = vmax.f32 %v447, 0.0
        %v456 = vmax.f32 %v452, 0.0
        %457 = vst [vmem:[#allocation2] sm:$0xff] %v455
        %458 = vst [vmem:[#allocation2 + $0x8] sm:$0xff] %v456
      $region44: #{nonlinear_probe_forward.1} parent=39 // pred_fallthru
        _
      %v459 = vld [vmem:[#allocation2] sm:$0xff]
      %v460 = vld [vmem:[#allocation2 + $0x8] sm:$0xff]
      %v461 = vld [vmem:[%s326] sm:$0xff]
      %v462 = vld [vmem:[%s326 + $0x8] sm:$0xff]
      %v463 = vld [vmem:[%s326 + $0x10] sm:$0xff]
      %v464 = vld [vmem:[%s326 + $0x18] sm:$0xff]
      %v465 = vld [vmem:[%s326 + $0x20] sm:$0xff]
      %v466 = vld [vmem:[%s326 + $0x28] sm:$0xff]
      %v467 = vld [vmem:[%s326 + $0x30] sm:$0xff]
      %v468 = vld [vmem:[%s326 + $0x38] sm:$0xff]
      %v469 = vld [vmem:[%s326 + $0x40] sm:$0xff]
      %v470 = vld [vmem:[%s326 + $0x48] sm:$0xff]
      %v471 = vld [vmem:[%s326 + $0x50] sm:$0xff]
      %v472 = vld [vmem:[%s326 + $0x58] sm:$0xff]
      %v473 = vld [vmem:[%s326 + $0x60] sm:$0xff]
      %v474 = vld [vmem:[%s326 + $0x68] sm:$0xff]
      %v475 = vld [vmem:[%s326 + $0x70] sm:$0xff]
      %v476 = vld [vmem:[%s326 + $0x78] sm:$0xff]
      %v477 = vld [vmem:[%s326 + $0x80] sm:$0xff]
      %v478 = vld [vmem:[%s326 + $0x88] sm:$0xff]
      %v479 = vld [vmem:[%s326 + $0x90] sm:$0xff]
      %v480 = vld [vmem:[%s326 + $0x98] sm:$0xff]
      %v481 = vld [vmem:[%s326 + $0xa0] sm:$0xff]
      %v482 = vld [vmem:[%s326 + $0xa8] sm:$0xff]
      %v483 = vld [vmem:[%s326 + $0xb0] sm:$0xff]
      %v484 = vld [vmem:[%s326 + $0xb8] sm:$0xff]
      %v485 = vld [vmem:[%s326 + $0xc0] sm:$0xff]
      %v486 = vld [vmem:[%s326 + $0xc8] sm:$0xff]
      %v487 = vld [vmem:[%s326 + $0xd0] sm:$0xff]
      %v488 = vld [vmem:[%s326 + $0xd8] sm:$0xff]
      %v489 = vld [vmem:[%s326 + $0xe0] sm:$0xff]
      %v490 = vld [vmem:[%s326 + $0xe8] sm:$0xff]
      %v491 = vld [vmem:[%s326 + $0xf0] sm:$0xff]
      %v492 = vld [vmem:[%s326 + $0xf8] sm:$0xff]
      %493 = vmatprep.subr.mxu0 %v462
      %494 = vmatpush1.msra.mxu0 %v461
      %495 = vmatprep.subr.mxu0 %v464
      %496 = vmatpush1.msra.mxu0 %v463
      %497 = vmatprep.subr.mxu0 %v466
      %498 = vmatpush1.msra.mxu0 %v465
      %499 = vmatprep.subr.mxu0 %v468
      %500 = vmatpush1.msra.mxu0 %v467
      %501 = vmatprep.subr.mxu0 %v470
      %502 = vmatpush1.msra.mxu0 %v469
      %503 = vmatprep.subr.mxu0 %v472
      %504 = vmatpush1.msra.mxu0 %v471
      %505 = vmatprep.subr.mxu0 %v474
      %506 = vmatpush1.msra.mxu0 %v473
      %507 = vmatprep.subr.mxu0 %v476
      %508 = vmatpush1.msra.mxu0 %v475
      %509 = vmatprep.subr.mxu0 %v478
      %510 = vmatpush1.msra.mxu0 %v477
      %511 = vmatprep.subr.mxu0 %v480
      %512 = vmatpush1.msra.mxu0 %v479
      %513 = vmatprep.subr.mxu0 %v482
      %514 = vmatpush1.msra.mxu0 %v481
      %515 = vmatprep.subr.mxu0 %v484
      %516 = vmatpush1.msra.mxu0 %v483
      %517 = vmatprep.subr.mxu0 %v486
      %518 = vmatpush1.msra.mxu0 %v485
      %519 = vmatprep.subr.mxu0 %v488
      %520 = vmatpush1.msra.mxu0 %v487
      %521 = vmatprep.subr.mxu0 %v490
      %522 = vmatpush1.msra.mxu0 %v489
      %523 = vmatprep.subr.mxu0 %v492
      %524 = vmatpush1.msra.mxu0 %v491
      %525 = vmatprep.subr.mxu0 0.0
      %526 = vmatpush1.msra.mxu0 0.0
      %527 = vmatprep.subr.mxu0 0.0
      %528 = vmatpush1.msra.mxu0 0.0
      %529 = vmatprep.subr.mxu0 0.0
      %530 = vmatpush1.msra.mxu0 0.0
      %531 = vmatprep.subr.mxu0 0.0
      %532 = vmatpush1.msra.mxu0 0.0
      %533 = vmatprep.subr.mxu0 0.0
      %534 = vmatpush1.msra.mxu0 0.0
      %535 = vmatprep.subr.mxu0 0.0
      %536 = vmatpush1.msra.mxu0 0.0
      %537 = vmatprep.subr.mxu0 0.0
      %538 = vmatpush1.msra.mxu0 0.0
      %539 = vmatprep.subr.mxu0 0.0
      %540 = vmatpush1.msra.mxu0 0.0
      %541 = vmatprep.subr.mxu0 0.0
      %542 = vmatpush1.msra.mxu0 0.0
      %543 = vmatprep.subr.mxu0 0.0
      %544 = vmatpush1.msra.mxu0 0.0
      %545 = vmatprep.subr.mxu0 0.0
      %546 = vmatpush1.msra.mxu0 0.0
      %547 = vmatprep.subr.mxu0 0.0
      %548 = vmatpush1.msra.mxu0 0.0
      %549 = vmatprep.subr.mxu0 0.0
      %550 = vmatpush1.msra.mxu0 0.0
      %551 = vmatprep.subr.mxu0 0.0
      %552 = vmatpush1.msra.mxu0 0.0
      %553 = vmatprep.subr.mxu0 0.0
      %554 = vmatpush1.msra.mxu0 0.0
      %555 = vmatprep.subr.mxu0 0.0
      %556 = vmatpush1.msra.mxu0 0.0
      %557 = vmatprep.mubr.f32.mxu0 0.0
      %558 = vmatmul.mubr.f32.gmra.mrb[0].mxu0 %v459
      %v559 = vpop.f32.mrb[0].mxu0
      %v560 = vadd.f32 0.0, %v559
      %v561 = vpop.f32.mrb[0].mxu0
      %v562 = vadd.f32 0.0, %v561
      %563 = vmatprep.mubr.f32.mxu0 0.0
      %564 = vmatmul.mubr.f32.gmra.mrb[0].mxu0 %v460
      %v565 = vpop.f32.mrb[0].mxu0
      %v566 = vadd.f32 0.0, %v565
      %v567 = vpop.f32.mrb[0].mxu0
      %v568 = vadd.f32 0.0, %v567
      %569 = vdwg.mxu0
      %570 = vst [vmem:[%s346] sm:$0xff] %v560
      %vm571 = vcmask 523264
      %572 = vst.msk [vmem:[%s346 + $0x8] sm:$0xff] %vm571, %v562
      %573 = vst [vmem:[%s346 + $0x10] sm:$0xff] %v566
      %574 = vst.msk [vmem:[%s346 + $0x18] sm:$0xff] %vm571, %v568
      %v575 = vld [vmem:[%s335] sm:$0xff]
      %v576 = vld [vmem:[%s335 + $0x8] sm:$0xff]
      %579 = vrot.lane.b32.xlu0 %v560, 64
      %v580 = vpop.permute.xlu0 %579
      %581 = vrot.lane.b32.xlu0 %v566, 64
      %v582 = vpop.permute.xlu0 %581
      %v585 = vmax.f32 %v560, %v580
      %v586 = vmax.f32 %v566, %v582
      %v587 = vmax.f32 %v585, %v562
      %v588 = vmax.f32 %v586, %v568
      %v589 = vsub.f32 %v560, %v587
      %v590 = vsub.f32 %v566, %v588
      %v591 = vmul.f32 %v589, 1.442695
      %v592 = vpow.pop %v591
      %v593 = vmul.f32 %v590, 1.442695
      %v594 = vpow.pop %v593
      %v595 = vadd.f32 %v592, 0.0
      %v596 = vadd.f32 %v594, 0.0
      %vm597 = vcmp.eq.s32.totalorder %v575, 0
      %vm598 = vcmp.eq.s32.totalorder %v576, 0
      %v599 = vsel %vm597, %v560, 0.0
      %v600 = vsel %vm598, %v566, 0.0
      %v601 = vadd.f32 %v599, 0.0
      %v602 = vadd.f32 %v600, 0.0
      %605 = vrot.lane.b32.xlu0 %v587, 64
      %v606 = vpop.permute.xlu0 %605
      %607 = vrot.lane.b32.xlu0 %v588, 64
      %v608 = vpop.permute.xlu0 %607
      %v611 = vsub.f32 %v560, %v606
      %v612 = vsub.f32 %v566, %v608
      %v613 = vmul.f32 %v611, 1.442695
      %v614 = vpow.pop %v613
      %v615 = vmul.f32 %v612, 1.442695
      %v616 = vpow.pop %v615
      %619 = vrot.lane.b32.xlu0 %v614, 64
      %v620 = vpop.permute.xlu0 %619
      %621 = vrot.lane.b32.xlu0 %v616, 64
      %v622 = vpop.permute.xlu0 %621
      %v625 = vadd.f32 %v595, %v620
      %v626 = vadd.f32 %v596, %v622
      %vm627 = vcmp.eq.s32.totalorder %v575, 1
      %vm628 = vcmp.eq.s32.totalorder %v576, 1
      %v629 = vsel %vm627, %v580, 0.0
      %v630 = vsel %vm628, %v582, 0.0
      %v631 = vadd.f32 %v601, %v629
      %v632 = vadd.f32 %v602, %v630
      %v633 = vsub.f32 %v562, %v587
      %v634 = vsub.f32 %v568, %v588
      %v635 = vmul.f32 %v633, 1.442695
      %v636 = vpow.pop %v635
      %v637 = vmul.f32 %v634, 1.442695
      %v638 = vpow.pop %v637
      %v639 = vadd.f32 %v625, %v636
      %v640 = vadd.f32 %v626, %v638
      %vm641 = vcmp.eq.s32.totalorder %v575, 2
      %vm642 = vcmp.eq.s32.totalorder %v576, 2
      %v643 = vsel %vm641, %v562, 0.0
      %v644 = vsel %vm642, %v568, 0.0
      %v645 = vadd.f32 %v631, %v643
      %v646 = vadd.f32 %v632, %v644
      %v647 = vlog2.pop %v639
      %v648 = vmul.f32 %v647, 0.6931472
      %v649 = vlog2.pop %v640
      %v650 = vmul.f32 %v649, 0.6931472
      %v651 = vadd.f32 %v587, %v648
      %v652 = vadd.f32 %v588, %v650
      %v653 = vsub.f32 %v645, %v651
      %v654 = vsub.f32 %v646, %v652
      %v655 = vsel %vm571, %v653, 0.0
      %v656 = vsel %vm571, %v654, 0.0
      %v657 = vadd.f32 %v655, %v656
      %v658 = vmul.f32 %v657, 0.25
      %659 = vst.msk [vmem:[%s355] sm:$0xff] %vm571, %v658
      %s660 = smul.u32 2, %s22
      %p661 = scmp.lt.s32.totalorder %s23, 1
      %s662 = scalar_select %p661, %s23, 1
      %p663 = scmp.lt.s32.totalorder %s660, 3
      %s664 = scalar_select %p663, %s660, 3
      %s665 = smul.addr %s664, 2
      %s666 = smul.addr %s662, 8
      %s667 = sadd.s32 %s665, %s666
      %s668 = smul.addr %s667, 8
      %s669 = scalar_lea.vmem %s5, %s668
      %p670 = scmp.lt.s32.totalorder %s22, 1
      %s671 = scalar_select %p670, %s22, 1
      %p672 = scmp.lt.s32.totalorder %s23, 1
      %s673 = scalar_select %p672, %s23, 1
      %s674 = smul.addr %s671, 2
      %s675 = sadd.s32 %s673, %s674
      %s676 = smul.addr %s675, 8
      %s677 = scalar_lea.vmem %s6, %s676
      // Predicated region
      $region45: #{nonlinear_probe_forward.1} parent=39 // pred_check
        %p678 = pneg %p172
      $region46: #{nonlinear_probe_forward.1} parent=39 // pred_check_branch
        %680 = sbr.rel (%p678) target = $region48
      $region47: #{nonlinear_probe_forward.1} parent=39 // pred_region
        %s681 = smul.u32 2, %s22
      $region48: #{nonlinear_probe_forward.1} parent=39 // pred_fallthru
        _
      // Predicated region
      $region49: #{nonlinear_probe_forward.1} parent=39 // pred_check
        %p682 = pneg %p200
      $region50: #{nonlinear_probe_forward.1} parent=39 // pred_check_branch
        %684 = sbr.rel (%p682) target = $region52
      $region51: #{nonlinear_probe_forward.1} parent=39 // pred_region
        _
      $region52: #{nonlinear_probe_forward.1} parent=39 // pred_fallthru
        _
    $region40: #{nonlinear_probe_forward.1} parent=5 // pred_fallthru
      _
    %p685 = scmp.le.s32.totalorder 2, %s13
    // Predicated region
    $region53: #{nonlinear_probe_forward.1} parent=5 // pred_check
      %p686 = pneg %p685
    $region54: #{nonlinear_probe_forward.1} parent=5 // pred_check_branch
      %688 = sbr.rel (%p686) target = $region56
    $region55: #{nonlinear_probe_forward.1} parent=5 // pred_region
      %s689 = ssub.s32 %s13, 2
      // Predicated region
      $region57: #{nonlinear_probe_forward.1} parent=55 // pred_check
        %p690 = pneg %p178
      $region58: #{nonlinear_probe_forward.1} parent=55 // pred_check_branch
        %692 = sbr.rel (%p690) target = $region60
      $region59: #{nonlinear_probe_forward.1} parent=55 // pred_region
        %s693 = smul.u32 2, %s24
        %p694 = scmp.lt.s32.totalorder %s25, 1
        %s695 = scalar_select %p694, %s25, 1
        %p696 = scmp.lt.s32.totalorder %s693, 3
        %s697 = scalar_select %p696, %s693, 3
        %s698 = smul.addr %s697, 2
        %s699 = smul.addr %s695, 8
        %s700 = sadd.s32 %s698, %s699
        %s701 = smul.addr %s700, 8
        %s702 = scalar_lea.vmem %s5, %s701
      $region60: #{nonlinear_probe_forward.1} parent=55 // pred_fallthru
        _
      // Predicated region
      $region61: #{nonlinear_probe_forward.1} parent=55 // pred_check
        %p703 = pneg %p206
      $region62: #{nonlinear_probe_forward.1} parent=55 // pred_check_branch
        %705 = sbr.rel (%p703) target = $region64
      $region63: #{nonlinear_probe_forward.1} parent=55 // pred_region
        %p706 = scmp.lt.s32.totalorder %s24, 1
        %s707 = scalar_select %p706, %s24, 1
        %p708 = scmp.lt.s32.totalorder %s25, 1
        %s709 = scalar_select %p708, %s25, 1
        %s710 = smul.addr %s707, 2
        %s711 = sadd.s32 %s709, %s710
        %s712 = smul.addr %s711, 8
        %s713 = scalar_lea.vmem %s6, %s712
      $region64: #{nonlinear_probe_forward.1} parent=55 // pred_fallthru
        _
    $region56: #{nonlinear_probe_forward.1} parent=5 // pred_fallthru
      _
  $region6: #{nonlinear_probe_forward.1} parent=0 // loop_footer
    %s17 = sadd.s32 1, %s13
  $region7: #{nonlinear_probe_forward.1} parent=0 // loop_footer_branch
    %12 = sbr.rel target = $region3
  $region8: #{nonlinear_probe_forward.1} parent=0 // loop_exit
    _

</llo_original>
